<compile_context>
chip_gen: v7x
topology: tpu7x:2x2x1
jax: 0.10.0
libtpu: 0.0.40
codegen_flags: <defaults>
</compile_context>

<pallas_src>
import functools

import jax
import jax.numpy as jnp
import numpy as np
from jax import lax
from jax.experimental import pallas as pl
from jax.experimental.pallas import tpu as pltpu

EPS = 1e-5


def _bottleneck_kernel(x_ref, s1_ref, b1_ref, w1_ref, b2_ref, w2_ref,
                       mask_ref, out_ref, *, W):
    # x_ref:    (NB, C, HW)          f32   (channel on sublane, spatial on lane)
    # s1/b1:    (C, 1)               f32   folded BN1 scale / shift
    # w1_ref:   (interC, C)          bf16  1x1 conv weight with BN2 scale folded
    # b2_ref:   (interC, 1)          f32   folded BN2 shift
    # w2_ref:   (9, growth, interC)  bf16  3x3 conv weight, tap-major
    # mask_ref: (9, HW)              f32   per-tap border-validity masks (0/1)
    # out_ref:  (NB, C+growth, HW)   f32   fused concat output
    NB, C, HW = x_ref.shape
    interC = w1_ref.shape[0]
    growth = w2_ref.shape[1]

    s1 = s1_ref[...]
    b1 = b1_ref[...]
    w1 = w1_ref[...]
    b2 = b2_ref[...]
    w2 = w2_ref[...]
    masks = mask_ref[...]

    # Hoisted out of the batch loop: per-tap weights, lane shifts and masks
    # (broadcasts are NOT CSE'd by JAX, so do them exactly once).
    w2k = [w2[k] for k in range(9)]                                  # (growth, interC)
    shifts = [(k // 3 - 1) * W + (k % 3 - 1) for k in range(9)]
    mk = [jnp.broadcast_to(masks[k:k + 1, :], (interC, HW)) for k in range(9)]

    for b in range(NB):          # NB is small (usually 1); grid pipelines batch
        x = x_ref[b]                                                 # (C, HW) f32

        # --- BN1 (affine, folded) + ReLU (f32 VPU) -----------------------
        h1 = jnp.maximum(x * s1 + b1, 0.0)

        # --- 1x1 conv on MXU in bf16 (BN2 scale folded), + shift + ReLU --
        y1 = jnp.dot(w1, h1.astype(jnp.bfloat16),
                     preferred_element_type=jnp.float32)             # (interC, HW)
        h2 = jnp.maximum(y1 + b2, 0.0)                               # f32

        # --- 3x3 conv: 9 masked lane-rolled taps, accumulated in f32 -----
        # (stride=1, dilation=1, pad=1 only -- wraps land on masked lanes)
        acc = jnp.zeros((growth, HW), jnp.float32)
        for k in range(9):
            s = shifts[k]
            tap = h2 if s == 0 else pltpu.roll(h2, shift=(-s) % HW, axis=1)
            acc = acc + jnp.dot(w2k[k], (tap * mk[k]).astype(jnp.bfloat16),
                                preferred_element_type=jnp.float32)

        # --- fused channel concat ----------------------------------------
        out_ref[b, :C, :] = x
        out_ref[b, C:, :] = acc


def _pick_batch_block(n, c, growth, hw):
    """VMEM-aware NB that keeps >=2 grid steps (v7x has 2 TensorCores)."""
    budget = 12 * 2 ** 20                      # conservative: v5e/v7x safe
    best = 1
    for nb in range(1, min(n, 4) + 1):
        if n % nb:
            continue
        if n >= 2 and n // nb < 2:             # keep at least 2 parallel steps
            continue
        blk = nb * hw * 4 * (c + (c + growth))  # in block + out block (f32)
        if 2 * blk > budget:                   # double-buffered by Pallas
            continue
        best = nb
    return best


def bottleneck_forward(x_nchw, params):
    (gamma1, beta1, mean1, var1, w1_oi11,
     gamma2, beta2, mean2, var2, w2_oihw) = params

    N, C, H, W = x_nchw.shape
    interC = w1_oi11.shape[0]
    growth = w2_oihw.shape[0]
    HW = H * W
    assert w2_oihw.shape[2:] == (3, 3), "roll-based im2col assumes 3x3/pad=1"

    # Fold BN into per-channel scale/shift (eval semantics).
    s1 = gamma1 / jnp.sqrt(var1 + EPS)
    b1 = beta1 - mean1 * s1
    s2 = gamma2 / jnp.sqrt(var2 + EPS)
    b2 = beta2 - mean2 * s2

    # Fold BN2 scale into the 1x1 conv weight; cast matmul weights to bf16.
    w1_f = (w1_oi11.reshape(interC, C).astype(jnp.float32)
            * s2[:, None]).astype(jnp.bfloat16)                    # (interC, C)
    # (O, I, kh, kw) -> (kh, kw, O, I) -> (9, O, I): tap-major for cheap slicing.
    w2_m = jnp.transpose(w2_oihw, (2, 3, 0, 1)).reshape(
        9, growth, interC).astype(jnp.bfloat16)

    # NCHW -> (N, C, H*W) is a free reshape: this IS the kernel layout.
    # x stays f32 so the concat passthrough is bit-exact.
    x_flat = x_nchw.reshape(N, C, HW).astype(jnp.float32)

    # Per-tap border masks (trace-time numpy, tiny constant input).
    yy, xx = np.meshgrid(np.arange(H), np.arange(W), indexing="ij")
    masks_np = np.zeros((9, HW), np.float32)
    for k in range(9):
        dy, dx = k // 3 - 1, k % 3 - 1
        valid = ((yy + dy >= 0) & (yy + dy < H) &
                 (xx + dx >= 0) & (xx + dx < W))
        masks_np[k] = valid.reshape(-1).astype(np.float32)
    masks = jnp.asarray(masks_np)

    NB = _pick_batch_block(N, C, growth, HW)
    grid = (N // NB,)

    # Explicit VMEM budget (generation-aware cap: v7x physical VMEM is 64 MiB).
    blk_bytes = NB * HW * 4 * (C + (C + growth))
    const_bytes = 4 * (9 * HW + 9 * growth * interC + interC * C
                       + 2 * C + 2 * interC)
    vmem_limit = int(min(64 * 2 ** 20,
                         max(32 * 2 ** 20, 8 * blk_bytes + const_bytes + (1 << 20))))

    kernel = functools.partial(_bottleneck_kernel, W=W)

    out_flat = pl.pallas_call(
        kernel,
        out_shape=jax.ShapeDtypeStruct((N, C + growth, HW), jnp.float32),
        grid=grid,
        in_specs=[
            pl.BlockSpec((NB, C, HW), lambda n: (n, 0, 0)),
            pl.BlockSpec((C, 1), lambda n: (0, 0)),
            pl.BlockSpec((C, 1), lambda n: (0, 0)),
            pl.BlockSpec((interC, C), lambda n: (0, 0)),
            pl.BlockSpec((interC, 1), lambda n: (0, 0)),
            pl.BlockSpec((9, growth, interC), lambda n: (0, 0, 0)),
            pl.BlockSpec((9, HW), lambda n: (0, 0)),
        ],
        out_specs=pl.BlockSpec((NB, C + growth, HW), lambda n: (n, 0, 0)),
        compiler_params=pltpu.CompilerParams(
            dimension_semantics=("parallel",),      # batch steps independent
            vmem_limit_bytes=vmem_limit),
    )(x_flat,
      s1.reshape(C, 1).astype(jnp.float32),
      b1.reshape(C, 1).astype(jnp.float32),
      w1_f,
      b2.reshape(interC, 1).astype(jnp.float32),
      w2_m,
      masks)

    return out_flat.reshape(N, C + growth, H, W)


def reference_forward(x_nchw, params):
    """Pure-JAX reference (eval-mode BN, lax convs, NCHW/OIHW, f32 HIGHEST)."""
    (gamma1, beta1, mean1, var1, w1_oi11,
     gamma2, beta2, mean2, var2, w2_oihw) = params

    def bn(x, g, b, m, v):
        return ((x - m[None, :, None, None]) /
                jnp.sqrt(v[None, :, None, None] + EPS) *
                g[None, :, None, None] + b[None, :, None, None])

    h1 = jnp.maximum(bn(x_nchw, gamma1, beta1, mean1, var1), 0.0)
    y1 = lax.conv_general_dilated(
        h1, w1_oi11, window_strides=(1, 1), padding="VALID",
        dimension_numbers=("NCHW", "OIHW", "NCHW"),
        precision=lax.Precision.HIGHEST)

    h2 = jnp.maximum(bn(y1, gamma2, beta2, mean2, var2), 0.0)
    y2 = lax.conv_general_dilated(
        h2, w2_oihw, window_strides=(1, 1), padding=((1, 1), (1, 1)),
        dimension_numbers=("NCHW", "OIHW", "NCHW"),
        precision=lax.Precision.HIGHEST)

    return jnp.concatenate([x_nchw, y2], axis=1)


if __name__ == "__main__":
    # Small shapes consistent with the module: nChannels=4, growthRate=4
    N, nChannels, H, W = 2, 4, 16, 16
    growthRate = 4
    interChannels = 4 * growthRate

    key = jax.random.PRNGKey(0)
    ks = jax.random.split(key, 11)

    x = jax.random.normal(ks[0], (N, nChannels, H, W), jnp.float32)

    gamma1 = jax.random.normal(ks[1], (nChannels,), jnp.float32) * 0.1 + 1.0
    beta1 = jax.random.normal(ks[2], (nChannels,), jnp.float32) * 0.1
    mean1 = jax.random.normal(ks[3], (nChannels,), jnp.float32) * 0.1
    var1 = jax.random.uniform(ks[4], (nChannels,), jnp.float32, 0.5, 1.5)

    # conv1 weight, PyTorch OIHW layout (interC, C, 1, 1)
    w1 = jax.random.normal(ks[5], (interChannels, nChannels, 1, 1),
                           jnp.float32) * (1.0 / np.sqrt(nChannels))

    gamma2 = jax.random.normal(ks[6], (interChannels,), jnp.float32) * 0.1 + 1.0
    beta2 = jax.random.normal(ks[7], (interChannels,), jnp.float32) * 0.1
    mean2 = jax.random.normal(ks[8], (interChannels,), jnp.float32) * 0.1
    var2 = jax.random.uniform(ks[9], (interChannels,), jnp.float32, 0.5, 1.5)

    # conv2 weight, PyTorch OIHW layout (growth, interC, 3, 3)
    w2 = jax.random.normal(ks[10], (growthRate, interChannels, 3, 3),
                           jnp.float32) * (1.0 / np.sqrt(9 * interChannels))

    params = (gamma1, beta1, mean1, var1, w1,
              gamma2, beta2, mean2, var2, w2)

    out = bottleneck_forward(x, params)
    out = jax.block_until_ready(out)

    ref = reference_forward(x, params)
    assert out.shape == (N, nChannels + growthRate, H, W), out.shape
    # bf16 MXU operands with f32 accumulation -> loosen tolerances accordingly.
    np.testing.assert_allclose(np.asarray(out), np.asarray(ref),
                               rtol=3e-2, atol=3e-2)

    print("KERNEL_OK")
</pallas_src>

<mosaic_0001>
module attributes {stable_mosaic.version = 11 : i64} {
  func.func @_bottleneck_kernel(%arg0: i32, %arg1: memref<1x4x256xf32, #tpu.memory_space<vmem>>, %arg2: memref<4x1xf32, #tpu.memory_space<vmem>>, %arg3: memref<4x1xf32, #tpu.memory_space<vmem>>, %arg4: memref<16x4xbf16, #tpu.memory_space<vmem>>, %arg5: memref<16x1xf32, #tpu.memory_space<vmem>>, %arg6: memref<9x4x16xbf16, #tpu.memory_space<vmem>>, %arg7: memref<9x256xf32, #tpu.memory_space<vmem>>, %arg8: memref<1x8x256xf32, #tpu.memory_space<vmem>>) attributes {dimension_semantics = [#tpu.dimension_semantics<parallel>], iteration_bounds = array<i64: 2>, scalar_prefetch = 0 : i64, scratch_operands = 0 : i64, tpu.core_type = #tpu.core_type<tc>, window_params = [{transform_indices = @transform_0, window_bounds = array<i64: 1, 4, 256>}, {pipeline_mode = #tpu.pipeline_mode<synchronous>, transform_indices = @transform_1, window_bounds = array<i64: 4, 1>}, {pipeline_mode = #tpu.pipeline_mode<synchronous>, transform_indices = @transform_2, window_bounds = array<i64: 4, 1>}, {pipeline_mode = #tpu.pipeline_mode<synchronous>, transform_indices = @transform_3, window_bounds = array<i64: 16, 4>}, {pipeline_mode = #tpu.pipeline_mode<synchronous>, transform_indices = @transform_4, window_bounds = array<i64: 16, 1>}, {pipeline_mode = #tpu.pipeline_mode<synchronous>, transform_indices = @transform_5, window_bounds = array<i64: 9, 4, 16>}, {pipeline_mode = #tpu.pipeline_mode<synchronous>, transform_indices = @transform_6, window_bounds = array<i64: 9, 256>}, {transform_indices = @transform_7, window_bounds = array<i64: 1, 8, 256>}]} {
    %c0 = arith.constant 0 : index
    %c0_0 = arith.constant 0 : index
    %0 = vector.load %arg2[%c0, %c0_0] : memref<4x1xf32, #tpu.memory_space<vmem>>, vector<4x1xf32>
    %c0_1 = arith.constant 0 : index
    %c0_2 = arith.constant 0 : index
    %1 = vector.load %arg3[%c0_1, %c0_2] : memref<4x1xf32, #tpu.memory_space<vmem>>, vector<4x1xf32>
    %c0_3 = arith.constant 0 : index
    %c0_4 = arith.constant 0 : index
    %2 = vector.load %arg4[%c0_3, %c0_4] : memref<16x4xbf16, #tpu.memory_space<vmem>>, vector<16x4xbf16>
    %c0_5 = arith.constant 0 : index
    %c0_6 = arith.constant 0 : index
    %3 = vector.load %arg5[%c0_5, %c0_6] : memref<16x1xf32, #tpu.memory_space<vmem>>, vector<16x1xf32>
    %c0_7 = arith.constant 0 : index
    %c0_8 = arith.constant 0 : index
    %c0_9 = arith.constant 0 : index
    %4 = vector.load %arg6[%c0_7, %c0_8, %c0_9] : memref<9x4x16xbf16, #tpu.memory_space<vmem>>, vector<9x4x16xbf16>
    %c0_10 = arith.constant 0 : index
    %c0_11 = arith.constant 0 : index
    %5 = vector.load %arg7[%c0_10, %c0_11] : memref<9x256xf32, #tpu.memory_space<vmem>>, vector<9x256xf32>
    %6 = vector.extract_strided_slice %4 {offsets = [0, 0, 0], sizes = [1, 4, 16], strides = [1, 1, 1]} : vector<9x4x16xbf16> to vector<1x4x16xbf16>
    %7 = vector.shape_cast %6 : vector<1x4x16xbf16> to vector<4x16xbf16>
    %8 = vector.extract_strided_slice %4 {offsets = [1, 0, 0], sizes = [1, 4, 16], strides = [1, 1, 1]} : vector<9x4x16xbf16> to vector<1x4x16xbf16>
    %9 = vector.shape_cast %8 : vector<1x4x16xbf16> to vector<4x16xbf16>
    %10 = vector.extract_strided_slice %4 {offsets = [2, 0, 0], sizes = [1, 4, 16], strides = [1, 1, 1]} : vector<9x4x16xbf16> to vector<1x4x16xbf16>
    %11 = vector.shape_cast %10 : vector<1x4x16xbf16> to vector<4x16xbf16>
    %12 = vector.extract_strided_slice %4 {offsets = [3, 0, 0], sizes = [1, 4, 16], strides = [1, 1, 1]} : vector<9x4x16xbf16> to vector<1x4x16xbf16>
    %13 = vector.shape_cast %12 : vector<1x4x16xbf16> to vector<4x16xbf16>
    %14 = vector.extract_strided_slice %4 {offsets = [4, 0, 0], sizes = [1, 4, 16], strides = [1, 1, 1]} : vector<9x4x16xbf16> to vector<1x4x16xbf16>
    %15 = vector.shape_cast %14 : vector<1x4x16xbf16> to vector<4x16xbf16>
    %16 = vector.extract_strided_slice %4 {offsets = [5, 0, 0], sizes = [1, 4, 16], strides = [1, 1, 1]} : vector<9x4x16xbf16> to vector<1x4x16xbf16>
    %17 = vector.shape_cast %16 : vector<1x4x16xbf16> to vector<4x16xbf16>
    %18 = vector.extract_strided_slice %4 {offsets = [6, 0, 0], sizes = [1, 4, 16], strides = [1, 1, 1]} : vector<9x4x16xbf16> to vector<1x4x16xbf16>
    %19 = vector.shape_cast %18 : vector<1x4x16xbf16> to vector<4x16xbf16>
    %20 = vector.extract_strided_slice %4 {offsets = [7, 0, 0], sizes = [1, 4, 16], strides = [1, 1, 1]} : vector<9x4x16xbf16> to vector<1x4x16xbf16>
    %21 = vector.shape_cast %20 : vector<1x4x16xbf16> to vector<4x16xbf16>
    %22 = vector.extract_strided_slice %4 {offsets = [8, 0, 0], sizes = [1, 4, 16], strides = [1, 1, 1]} : vector<9x4x16xbf16> to vector<1x4x16xbf16>
    %23 = vector.shape_cast %22 : vector<1x4x16xbf16> to vector<4x16xbf16>
    %24 = vector.extract_strided_slice %5 {offsets = [0, 0], sizes = [1, 256], strides = [1, 1]} : vector<9x256xf32> to vector<1x256xf32>
    %25 = vector.shape_cast %24 : vector<1x256xf32> to vector<1x256xf32>
    %26 = vector.broadcast %25 : vector<1x256xf32> to vector<16x256xf32>
    %27 = vector.extract_strided_slice %5 {offsets = [1, 0], sizes = [1, 256], strides = [1, 1]} : vector<9x256xf32> to vector<1x256xf32>
    %28 = vector.shape_cast %27 : vector<1x256xf32> to vector<1x256xf32>
    %29 = vector.broadcast %28 : vector<1x256xf32> to vector<16x256xf32>
    %30 = vector.extract_strided_slice %5 {offsets = [2, 0], sizes = [1, 256], strides = [1, 1]} : vector<9x256xf32> to vector<1x256xf32>
    %31 = vector.shape_cast %30 : vector<1x256xf32> to vector<1x256xf32>
    %32 = vector.broadcast %31 : vector<1x256xf32> to vector<16x256xf32>
    %33 = vector.extract_strided_slice %5 {offsets = [3, 0], sizes = [1, 256], strides = [1, 1]} : vector<9x256xf32> to vector<1x256xf32>
    %34 = vector.shape_cast %33 : vector<1x256xf32> to vector<1x256xf32>
    %35 = vector.broadcast %34 : vector<1x256xf32> to vector<16x256xf32>
    %36 = vector.extract_strided_slice %5 {offsets = [4, 0], sizes = [1, 256], strides = [1, 1]} : vector<9x256xf32> to vector<1x256xf32>
    %37 = vector.shape_cast %36 : vector<1x256xf32> to vector<1x256xf32>
    %38 = vector.broadcast %37 : vector<1x256xf32> to vector<16x256xf32>
    %39 = vector.extract_strided_slice %5 {offsets = [5, 0], sizes = [1, 256], strides = [1, 1]} : vector<9x256xf32> to vector<1x256xf32>
    %40 = vector.shape_cast %39 : vector<1x256xf32> to vector<1x256xf32>
    %41 = vector.broadcast %40 : vector<1x256xf32> to vector<16x256xf32>
    %42 = vector.extract_strided_slice %5 {offsets = [6, 0], sizes = [1, 256], strides = [1, 1]} : vector<9x256xf32> to vector<1x256xf32>
    %43 = vector.shape_cast %42 : vector<1x256xf32> to vector<1x256xf32>
    %44 = vector.broadcast %43 : vector<1x256xf32> to vector<16x256xf32>
    %45 = vector.extract_strided_slice %5 {offsets = [7, 0], sizes = [1, 256], strides = [1, 1]} : vector<9x256xf32> to vector<1x256xf32>
    %46 = vector.shape_cast %45 : vector<1x256xf32> to vector<1x256xf32>
    %47 = vector.broadcast %46 : vector<1x256xf32> to vector<16x256xf32>
    %48 = vector.extract_strided_slice %5 {offsets = [8, 0], sizes = [1, 256], strides = [1, 1]} : vector<9x256xf32> to vector<1x256xf32>
    %49 = vector.shape_cast %48 : vector<1x256xf32> to vector<1x256xf32>
    %50 = vector.broadcast %49 : vector<1x256xf32> to vector<16x256xf32>
    %c0_12 = arith.constant 0 : index
    %c0_13 = arith.constant 0 : index
    %c0_14 = arith.constant 0 : index
    %51 = vector.load %arg1[%c0_12, %c0_13, %c0_14] : memref<1x4x256xf32, #tpu.memory_space<vmem>>, vector<1x4x256xf32>
    %52 = vector.shape_cast %51 : vector<1x4x256xf32> to vector<4x256xf32>
    %53 = vector.broadcast %0 : vector<4x1xf32> to vector<4x256xf32>
    %54 = arith.mulf %52, %53 : vector<4x256xf32>
    %55 = vector.broadcast %1 : vector<4x1xf32> to vector<4x256xf32>
    %56 = arith.addf %54, %55 : vector<4x256xf32>
    %cst = arith.constant 0.000000e+00 : f32
    %57 = vector.broadcast %cst : f32 to vector<4x256xf32>
    %58 = arith.maximumf %56, %57 : vector<4x256xf32>
    %59 = arith.truncf %58 : vector<4x256xf32> to vector<4x256xbf16>
    %cst_15 = arith.constant dense<0.000000e+00> : vector<16x256xf32>
    %60 = tpu.matmul %2, %59, %cst_15 {dimension_numbers = #tpu.dot_dimension_numbers<[1], [0], [0], [1], [0, 0, 1, 1], [], []>} : vector<16x4xbf16>, vector<4x256xbf16>, vector<16x256xf32> -> vector<16x256xf32>
    %61 = vector.broadcast %3 : vector<16x1xf32> to vector<16x256xf32>
    %62 = arith.addf %60, %61 : vector<16x256xf32>
    %cst_16 = arith.constant 0.000000e+00 : f32
    %63 = vector.broadcast %cst_16 : f32 to vector<16x256xf32>
    %64 = arith.maximumf %62, %63 : vector<16x256xf32>
    %cst_17 = arith.constant 0.000000e+00 : f32
    %65 = vector.broadcast %cst_17 : f32 to vector<4x256xf32>
    %c17_i32 = arith.constant 17 : i32
    %66 = tpu.dynamic_rotate %64 by %c17_i32 dim 1 : vector<16x256xf32>, i32 -> vector<16x256xf32>
    %67 = arith.mulf %66, %26 : vector<16x256xf32>
    %68 = arith.truncf %67 : vector<16x256xf32> to vector<16x256xbf16>
    %cst_18 = arith.constant dense<0.000000e+00> : vector<4x256xf32>
    %69 = tpu.matmul %7, %68, %cst_18 {dimension_numbers = #tpu.dot_dimension_numbers<[1], [0], [0], [1], [0, 0, 1, 1], [], []>} : vector<4x16xbf16>, vector<16x256xbf16>, vector<4x256xf32> -> vector<4x256xf32>
    %70 = arith.addf %65, %69 : vector<4x256xf32>
    %c16_i32 = arith.constant 16 : i32
    %71 = tpu.dynamic_rotate %64 by %c16_i32 dim 1 : vector<16x256xf32>, i32 -> vector<16x256xf32>
    %72 = arith.mulf %71, %29 : vector<16x256xf32>
    %73 = arith.truncf %72 : vector<16x256xf32> to vector<16x256xbf16>
    %cst_19 = arith.constant dense<0.000000e+00> : vector<4x256xf32>
    %74 = tpu.matmul %9, %73, %cst_19 {dimension_numbers = #tpu.dot_dimension_numbers<[1], [0], [0], [1], [0, 0, 1, 1], [], []>} : vector<4x16xbf16>, vector<16x256xbf16>, vector<4x256xf32> -> vector<4x256xf32>
    %75 = arith.addf %70, %74 : vector<4x256xf32>
    %c15_i32 = arith.constant 15 : i32
    %76 = tpu.dynamic_rotate %64 by %c15_i32 dim 1 : vector<16x256xf32>, i32 -> vector<16x256xf32>
    %77 = arith.mulf %76, %32 : vector<16x256xf32>
    %78 = arith.truncf %77 : vector<16x256xf32> to vector<16x256xbf16>
    %cst_20 = arith.constant dense<0.000000e+00> : vector<4x256xf32>
    %79 = tpu.matmul %11, %78, %cst_20 {dimension_numbers = #tpu.dot_dimension_numbers<[1], [0], [0], [1], [0, 0, 1, 1], [], []>} : vector<4x16xbf16>, vector<16x256xbf16>, vector<4x256xf32> -> vector<4x256xf32>
    %80 = arith.addf %75, %79 : vector<4x256xf32>
    %c1_i32 = arith.constant 1 : i32
    %81 = tpu.dynamic_rotate %64 by %c1_i32 dim 1 : vector<16x256xf32>, i32 -> vector<16x256xf32>
    %82 = arith.mulf %81, %35 : vector<16x256xf32>
    %83 = arith.truncf %82 : vector<16x256xf32> to vector<16x256xbf16>
    %cst_21 = arith.constant dense<0.000000e+00> : vector<4x256xf32>
    %84 = tpu.matmul %13, %83, %cst_21 {dimension_numbers = #tpu.dot_dimension_numbers<[1], [0], [0], [1], [0, 0, 1, 1], [], []>} : vector<4x16xbf16>, vector<16x256xbf16>, vector<4x256xf32> -> vector<4x256xf32>
    %85 = arith.addf %80, %84 : vector<4x256xf32>
    %86 = arith.mulf %64, %38 : vector<16x256xf32>
    %87 = arith.truncf %86 : vector<16x256xf32> to vector<16x256xbf16>
    %cst_22 = arith.constant dense<0.000000e+00> : vector<4x256xf32>
    %88 = tpu.matmul %15, %87, %cst_22 {dimension_numbers = #tpu.dot_dimension_numbers<[1], [0], [0], [1], [0, 0, 1, 1], [], []>} : vector<4x16xbf16>, vector<16x256xbf16>, vector<4x256xf32> -> vector<4x256xf32>
    %89 = arith.addf %85, %88 : vector<4x256xf32>
    %c255_i32 = arith.constant 255 : i32
    %90 = tpu.dynamic_rotate %64 by %c255_i32 dim 1 : vector<16x256xf32>, i32 -> vector<16x256xf32>
    %91 = arith.mulf %90, %41 : vector<16x256xf32>
    %92 = arith.truncf %91 : vector<16x256xf32> to vector<16x256xbf16>
    %cst_23 = arith.constant dense<0.000000e+00> : vector<4x256xf32>
    %93 = tpu.matmul %17, %92, %cst_23 {dimension_numbers = #tpu.dot_dimension_numbers<[1], [0], [0], [1], [0, 0, 1, 1], [], []>} : vector<4x16xbf16>, vector<16x256xbf16>, vector<4x256xf32> -> vector<4x256xf32>
    %94 = arith.addf %89, %93 : vector<4x256xf32>
    %c241_i32 = arith.constant 241 : i32
    %95 = tpu.dynamic_rotate %64 by %c241_i32 dim 1 : vector<16x256xf32>, i32 -> vector<16x256xf32>
    %96 = arith.mulf %95, %44 : vector<16x256xf32>
    %97 = arith.truncf %96 : vector<16x256xf32> to vector<16x256xbf16>
    %cst_24 = arith.constant dense<0.000000e+00> : vector<4x256xf32>
    %98 = tpu.matmul %19, %97, %cst_24 {dimension_numbers = #tpu.dot_dimension_numbers<[1], [0], [0], [1], [0, 0, 1, 1], [], []>} : vector<4x16xbf16>, vector<16x256xbf16>, vector<4x256xf32> -> vector<4x256xf32>
    %99 = arith.addf %94, %98 : vector<4x256xf32>
    %c240_i32 = arith.constant 240 : i32
    %100 = tpu.dynamic_rotate %64 by %c240_i32 dim 1 : vector<16x256xf32>, i32 -> vector<16x256xf32>
    %101 = arith.mulf %100, %47 : vector<16x256xf32>
    %102 = arith.truncf %101 : vector<16x256xf32> to vector<16x256xbf16>
    %cst_25 = arith.constant dense<0.000000e+00> : vector<4x256xf32>
    %103 = tpu.matmul %21, %102, %cst_25 {dimension_numbers = #tpu.dot_dimension_numbers<[1], [0], [0], [1], [0, 0, 1, 1], [], []>} : vector<4x16xbf16>, vector<16x256xbf16>, vector<4x256xf32> -> vector<4x256xf32>
    %104 = arith.addf %99, %103 : vector<4x256xf32>
    %c239_i32 = arith.constant 239 : i32
    %105 = tpu.dynamic_rotate %64 by %c239_i32 dim 1 : vector<16x256xf32>, i32 -> vector<16x256xf32>
    %106 = arith.mulf %105, %50 : vector<16x256xf32>
    %107 = arith.truncf %106 : vector<16x256xf32> to vector<16x256xbf16>
    %cst_26 = arith.constant dense<0.000000e+00> : vector<4x256xf32>
    %108 = tpu.matmul %23, %107, %cst_26 {dimension_numbers = #tpu.dot_dimension_numbers<[1], [0], [0], [1], [0, 0, 1, 1], [], []>} : vector<4x16xbf16>, vector<16x256xbf16>, vector<4x256xf32> -> vector<4x256xf32>
    %109 = arith.addf %104, %108 : vector<4x256xf32>
    %c0_27 = arith.constant 0 : index
    %c0_28 = arith.constant 0 : index
    %c0_29 = arith.constant 0 : index
    %110 = vector.load %arg8[%c0_27, %c0_28, %c0_29] : memref<1x8x256xf32, #tpu.memory_space<vmem>>, vector<1x4x256xf32>
    %111 = vector.shape_cast %110 : vector<1x4x256xf32> to vector<4x256xf32>
    %112 = vector.shape_cast %52 : vector<4x256xf32> to vector<1x4x256xf32>
    tpu.vector_store %arg8[%c0_27, %c0_28, %c0_29], %112 {strides = array<i32>} : memref<1x8x256xf32, #tpu.memory_space<vmem>>, vector<1x4x256xf32>,
    %c0_30 = arith.constant 0 : index
    %c4 = arith.constant 4 : index
    %c0_31 = arith.constant 0 : index
    %113 = vector.load %arg8[%c0_30, %c4, %c0_31] : memref<1x8x256xf32, #tpu.memory_space<vmem>>, vector<1x4x256xf32>
    %114 = vector.shape_cast %113 : vector<1x4x256xf32> to vector<4x256xf32>
    %115 = vector.shape_cast %109 : vector<4x256xf32> to vector<1x4x256xf32>
    tpu.vector_store %arg8[%c0_30, %c4, %c0_31], %115 {strides = array<i32>} : memref<1x8x256xf32, #tpu.memory_space<vmem>>, vector<1x4x256xf32>,
    return
  }
  func.func @transform_0(%arg0: i32) -> (i32, i32, i32) {
    %c0_i32 = arith.constant 0 : i32
    %c0_i32_0 = arith.constant 0 : i32
    %c0_i32_1 = arith.constant 0 : i32
    return %arg0, %c0_i32, %c0_i32_0 : i32, i32, i32
  }
  func.func @transform_1(%arg0: i32) -> (i32, i32) {
    %c0_i32 = arith.constant 0 : i32
    %c0_i32_0 = arith.constant 0 : i32
    %c0_i32_1 = arith.constant 0 : i32
    return %c0_i32, %c0_i32_0 : i32, i32
  }
  func.func @transform_2(%arg0: i32) -> (i32, i32) {
    %c0_i32 = arith.constant 0 : i32
    %c0_i32_0 = arith.constant 0 : i32
    %c0_i32_1 = arith.constant 0 : i32
    return %c0_i32, %c0_i32_0 : i32, i32
  }
  func.func @transform_3(%arg0: i32) -> (i32, i32) {
    %c0_i32 = arith.constant 0 : i32
    %c0_i32_0 = arith.constant 0 : i32
    %c0_i32_1 = arith.constant 0 : i32
    return %c0_i32, %c0_i32_0 : i32, i32
  }
  func.func @transform_4(%arg0: i32) -> (i32, i32) {
    %c0_i32 = arith.constant 0 : i32
    %c0_i32_0 = arith.constant 0 : i32
    %c0_i32_1 = arith.constant 0 : i32
    return %c0_i32, %c0_i32_0 : i32, i32
  }
  func.func @transform_5(%arg0: i32) -> (i32, i32, i32) {
    %c0_i32 = arith.constant 0 : i32
    %c0_i32_0 = arith.constant 0 : i32
    %c0_i32_1 = arith.constant 0 : i32
    %c0_i32_2 = arith.constant 0 : i32
    return %c0_i32, %c0_i32_0, %c0_i32_1 : i32, i32, i32
  }
  func.func @transform_6(%arg0: i32) -> (i32, i32) {
    %c0_i32 = arith.constant 0 : i32
    %c0_i32_0 = arith.constant 0 : i32
    %c0_i32_1 = arith.constant 0 : i32
    return %c0_i32, %c0_i32_0 : i32, i32
  }
  func.func @transform_7(%arg0: i32) -> (i32, i32, i32) {
    %c0_i32 = arith.constant 0 : i32
    %c0_i32_0 = arith.constant 0 : i32
    %c0_i32_1 = arith.constant 0 : i32
    return %arg0, %c0_i32, %c0_i32_0 : i32, i32, i32
  }
}

</mosaic_0001>

<llo_original>
// kernel: tpu_custom_call.1
$region0: #{tpu_custom_call.1}
  #allocation0 [shape = 'u32[]', space=smem, size = 0x4, offset = 0x4, fixed_abs, tag = 'smem constant byte address 0x4 - core index']
  #allocation1 [shape = 'u32[144,128]{1,0:T(1,128)}', space=vmem, size = 0x12000, scoped, tag = 'internal scratch']
  %s0 = inlined_call_operand.hbm [shape: f32[2,4,256], index: 0, kind: input, shape index: {}]
  %s1 = inlined_call_operand.vmem [shape: f32[4,1], index: 1, kind: input, shape index: {}]
  %s2 = inlined_call_operand.vmem [shape: f32[4,1], index: 2, kind: input, shape index: {}]
  %s3 = inlined_call_operand.vmem [shape: bf16[16,4], index: 3, kind: input, shape index: {}]
  %s4 = inlined_call_operand.vmem [shape: f32[16,1], index: 4, kind: input, shape index: {}]
  %s5 = inlined_call_operand.vmem [shape: bf16[9,4,16], index: 5, kind: input, shape index: {}]
  %s6 = inlined_call_operand.vmem [shape: f32[9,256], index: 6, kind: input, shape index: {}]
  %s7 = inlined_call_operand.hbm [shape: f32[2,8,256], index: 7, kind: output, shape index: {}]
  %s8 = sld [smem:[#allocation0]]
  $region65: #{tpu_custom_call.1} parent=0
    _
  %s10 = ssub.s32 1, %s8
  %s11 = scalar_select 0, %s10, %s8
  $region1: #{tpu_custom_call.1} parent=0
    #allocation2 [shape = 'u8[8192]{0}', space=vmem, size = 0x2000, scoped, tag = 'input window, operand 0']
    #allocation3 [shape = 's32[2]{0}', space=sflag, size = 0x8, scoped, tag = 'scoped memory for tpu_custom_call.1']
    #allocation4 [shape = 's32[2]{0}', space=sflag, size = 0x8, scoped, tag = 'scoped memory for tpu_custom_call.1']
    #allocation5 [shape = 'u8[16384]{0}', space=vmem, size = 0x4000, scoped, tag = 'output window, operand 0']
    %12 = vsyncpa [#allocation3], 0
    %s13 = scalar_lea.sflag [#allocation3], 1
    %14 = vsyncpa %s13, 0
    %15 = vsyncpa [#allocation4], 0
    %s16 = scalar_lea.sflag [#allocation4], 1
    %17 = vsyncpa %s16, 0
    loop: start=0, step=1, limit=4
    $region2: #{tpu_custom_call.1} parent=1 // loop_pre_header
      _
    $region3: #{tpu_custom_call.1} parent=1 // loop_header
      %s19 = sphi 0, %s23
      %p20 = scmp.ge.s32.totalorder %s19, 4
      %s29 = sphi 0, %s31
      %s32 = sphi 0, %s29
      %s33 = sphi 0, %s32
      %s49 = sphi 0, %s33
      %s53 = sphi 0, %s53
      %s55 = sphi 0, %s53
      %s56 = sphi 0, %s55
      %s70 = sphi 0, %s56
      %s74 = sphi 0, %s74
      %s76 = sphi 0, %s74
      %s77 = sphi 0, %s76
      %s91 = sphi 0, %s77
      %s95 = sphi 0, %s95
      %s97 = sphi 0, %s95
      %s98 = sphi 0, %s97
      %s112 = sphi 0, %s98
      %s116 = sphi 0, %s116
      %s118 = sphi 0, %s116
      %s119 = sphi 0, %s118
      %s133 = sphi 0, %s119
      %s137 = sphi 0, %s137
      %s139 = sphi 0, %s137
      %s140 = sphi 0, %s139
      %s154 = sphi 0, %s140
      %s158 = sphi 0, %s158
      %s160 = sphi 0, %s158
      %s161 = sphi 0, %s160
      %s175 = sphi 0, %s161
      %s181 = sphi 0, %s183
      %s184 = sphi 0, %s181
      %s185 = sphi 0, %s184
      %s201 = sphi 0, %s185
    $region4: #{tpu_custom_call.1} parent=1 // loop_header_branch
      %22 = sbr.rel (%p20) target = $region8
    $region5: #{tpu_custom_call.1} parent=1 // loop_body
      %s24 = ssub.s32 %s19, 1
      %s25 = ssub.s32 %s19, 2
      %s26 = sadd.s32 %s19, 1
      %s27 = ssub.s32 %s19, %s26
      %p28 = scmp.eq.s32.totalorder %s27, 0
      %s30 = sadd.s32 %s29, 1
      %s31 = scalar_select %p28, %s29, %s30
      %p34 = pneg %p28
      %p35 = scmp.eq.s32.totalorder %s19, 1
      %p36 = por %p34, %p35
      %p37 = scmp.ne.s32.totalorder %s29, %s32
      %p38 = scmp.eq.s32.totalorder %s19, 0
      %p39 = por %p37, %p38
      %p40 = scmp.ne.s32.totalorder %s29, %s32
      %p41 = scmp.eq.s32.totalorder %s24, 1
      %p42 = por %p40, %p41
      %p43 = scmp.ne.s32.totalorder %s32, %s33
      %p44 = scmp.eq.s32.totalorder %s24, 0
      %p45 = por %p43, %p44
      %p46 = scmp.ne.s32.totalorder %s32, %s33
      %p47 = scmp.eq.s32.totalorder %s25, 1
      %p48 = por %p46, %p47
      %p50 = scmp.ne.s32.totalorder %s33, %s49
      %p51 = scmp.eq.s32.totalorder %s25, 0
      %p52 = por %p50, %p51
      %s54 = sadd.s32 %s53, 1
      %p57 = scmp.eq.s32.totalorder %s19, 1
      %p58 = scmp.ne.s32.totalorder %s53, %s55
      %p59 = scmp.eq.s32.totalorder %s19, 0
      %p60 = por %p58, %p59
      %p61 = scmp.ne.s32.totalorder %s53, %s55
      %p62 = scmp.eq.s32.totalorder %s24, 1
      %p63 = por %p61, %p62
      %p64 = scmp.ne.s32.totalorder %s55, %s56
      %p65 = scmp.eq.s32.totalorder %s24, 0
      %p66 = por %p64, %p65
      %p67 = scmp.ne.s32.totalorder %s55, %s56
      %p68 = scmp.eq.s32.totalorder %s25, 1
      %p69 = por %p67, %p68
      %p71 = scmp.ne.s32.totalorder %s56, %s70
      %p72 = scmp.eq.s32.totalorder %s25, 0
      %p73 = por %p71, %p72
      %s75 = sadd.s32 %s74, 1
      %p78 = scmp.eq.s32.totalorder %s19, 1
      %p79 = scmp.ne.s32.totalorder %s74, %s76
      %p80 = scmp.eq.s32.totalorder %s19, 0
      %p81 = por %p79, %p80
      %p82 = scmp.ne.s32.totalorder %s74, %s76
      %p83 = scmp.eq.s32.totalorder %s24, 1
      %p84 = por %p82, %p83
      %p85 = scmp.ne.s32.totalorder %s76, %s77
      %p86 = scmp.eq.s32.totalorder %s24, 0
      %p87 = por %p85, %p86
      %p88 = scmp.ne.s32.totalorder %s76, %s77
      %p89 = scmp.eq.s32.totalorder %s25, 1
      %p90 = por %p88, %p89
      %p92 = scmp.ne.s32.totalorder %s77, %s91
      %p93 = scmp.eq.s32.totalorder %s25, 0
      %p94 = por %p92, %p93
      %s96 = sadd.s32 %s95, 1
      %p99 = scmp.eq.s32.totalorder %s19, 1
      %p100 = scmp.ne.s32.totalorder %s95, %s97
      %p101 = scmp.eq.s32.totalorder %s19, 0
      %p102 = por %p100, %p101
      %p103 = scmp.ne.s32.totalorder %s95, %s97
      %p104 = scmp.eq.s32.totalorder %s24, 1
      %p105 = por %p103, %p104
      %p106 = scmp.ne.s32.totalorder %s97, %s98
      %p107 = scmp.eq.s32.totalorder %s24, 0
      %p108 = por %p106, %p107
      %p109 = scmp.ne.s32.totalorder %s97, %s98
      %p110 = scmp.eq.s32.totalorder %s25, 1
      %p111 = por %p109, %p110
      %p113 = scmp.ne.s32.totalorder %s98, %s112
      %p114 = scmp.eq.s32.totalorder %s25, 0
      %p115 = por %p113, %p114
      %s117 = sadd.s32 %s116, 1
      %p120 = scmp.eq.s32.totalorder %s19, 1
      %p121 = scmp.ne.s32.totalorder %s116, %s118
      %p122 = scmp.eq.s32.totalorder %s19, 0
      %p123 = por %p121, %p122
      %p124 = scmp.ne.s32.totalorder %s116, %s118
      %p125 = scmp.eq.s32.totalorder %s24, 1
      %p126 = por %p124, %p125
      %p127 = scmp.ne.s32.totalorder %s118, %s119
      %p128 = scmp.eq.s32.totalorder %s24, 0
      %p129 = por %p127, %p128
      %p130 = scmp.ne.s32.totalorder %s118, %s119
      %p131 = scmp.eq.s32.totalorder %s25, 1
      %p132 = por %p130, %p131
      %p134 = scmp.ne.s32.totalorder %s119, %s133
      %p135 = scmp.eq.s32.totalorder %s25, 0
      %p136 = por %p134, %p135
      %s138 = sadd.s32 %s137, 1
      %p141 = scmp.eq.s32.totalorder %s19, 1
      %p142 = scmp.ne.s32.totalorder %s137, %s139
      %p143 = scmp.eq.s32.totalorder %s19, 0
      %p144 = por %p142, %p143
      %p145 = scmp.ne.s32.totalorder %s137, %s139
      %p146 = scmp.eq.s32.totalorder %s24, 1
      %p147 = por %p145, %p146
      %p148 = scmp.ne.s32.totalorder %s139, %s140
      %p149 = scmp.eq.s32.totalorder %s24, 0
      %p150 = por %p148, %p149
      %p151 = scmp.ne.s32.totalorder %s139, %s140
      %p152 = scmp.eq.s32.totalorder %s25, 1
      %p153 = por %p151, %p152
      %p155 = scmp.ne.s32.totalorder %s140, %s154
      %p156 = scmp.eq.s32.totalorder %s25, 0
      %p157 = por %p155, %p156
      %s159 = sadd.s32 %s158, 1
      %p162 = scmp.eq.s32.totalorder %s19, 1
      %p163 = scmp.ne.s32.totalorder %s158, %s160
      %p164 = scmp.eq.s32.totalorder %s19, 0
      %p165 = por %p163, %p164
      %p166 = scmp.ne.s32.totalorder %s158, %s160
      %p167 = scmp.eq.s32.totalorder %s24, 1
      %p168 = por %p166, %p167
      %p169 = scmp.ne.s32.totalorder %s160, %s161
      %p170 = scmp.eq.s32.totalorder %s24, 0
      %p171 = por %p169, %p170
      %p172 = scmp.ne.s32.totalorder %s160, %s161
      %p173 = scmp.eq.s32.totalorder %s25, 1
      %p174 = por %p172, %p173
      %p176 = scmp.ne.s32.totalorder %s161, %s175
      %p177 = scmp.eq.s32.totalorder %s25, 0
      %p178 = por %p176, %p177
      %s179 = ssub.s32 %s19, %s26
      %p180 = scmp.eq.s32.totalorder %s179, 0
      %s182 = sadd.s32 %s181, 1
      %s183 = scalar_select %p180, %s181, %s182
      %p186 = pneg %p180
      %p187 = scmp.eq.s32.totalorder %s19, 1
      %p188 = por %p186, %p187
      %p189 = scmp.ne.s32.totalorder %s181, %s184
      %p190 = scmp.eq.s32.totalorder %s19, 0
      %p191 = por %p189, %p190
      %p192 = scmp.ne.s32.totalorder %s181, %s184
      %p193 = scmp.eq.s32.totalorder %s24, 1
      %p194 = por %p192, %p193
      %p195 = scmp.ne.s32.totalorder %s184, %s185
      %p196 = scmp.eq.s32.totalorder %s24, 0
      %p197 = por %p195, %p196
      %p198 = scmp.ne.s32.totalorder %s184, %s185
      %p199 = scmp.eq.s32.totalorder %s25, 1
      %p200 = por %p198, %p199
      %p202 = scmp.ne.s32.totalorder %s185, %s201
      %p203 = scmp.eq.s32.totalorder %s25, 0
      %p204 = por %p202, %p203
      %p205 = scmp.le.s32.totalorder 1, %s19
      %p206 = scmp.lt.s32.totalorder %s19, 3
      %p207 = pnand %p205, %p206
      %p208 = pneg %p207
      // Predicated region
      $region9: #{tpu_custom_call.1} parent=5 // pred_check
        _
      $region10: #{tpu_custom_call.1} parent=5 // pred_check_branch
        %210 = sbr.rel (%p207) target = $region12
      $region11: #{tpu_custom_call.1} parent=5 // pred_region
        %s211 = ssub.s32 %s19, 1
        // Predicated region
        $region13: #{tpu_custom_call.1} parent=11 // pred_check
          %p212 = pneg %p66
        $region14: #{tpu_custom_call.1} parent=11 // pred_check_branch
          %214 = sbr.rel (%p212) target = $region16
        $region15: #{tpu_custom_call.1} parent=11 // pred_region
          _
        $region16: #{tpu_custom_call.1} parent=11 // pred_fallthru
          _
        // Predicated region
        $region17: #{tpu_custom_call.1} parent=11 // pred_check
          %p215 = pneg %p87
        $region18: #{tpu_custom_call.1} parent=11 // pred_check_branch
          %217 = sbr.rel (%p215) target = $region20
        $region19: #{tpu_custom_call.1} parent=11 // pred_region
          _
        $region20: #{tpu_custom_call.1} parent=11 // pred_fallthru
          _
        // Predicated region
        $region21: #{tpu_custom_call.1} parent=11 // pred_check
          %p218 = pneg %p108
        $region22: #{tpu_custom_call.1} parent=11 // pred_check_branch
          %220 = sbr.rel (%p218) target = $region24
        $region23: #{tpu_custom_call.1} parent=11 // pred_region
          _
        $region24: #{tpu_custom_call.1} parent=11 // pred_fallthru
          _
        // Predicated region
        $region25: #{tpu_custom_call.1} parent=11 // pred_check
          %p221 = pneg %p129
        $region26: #{tpu_custom_call.1} parent=11 // pred_check_branch
          %223 = sbr.rel (%p221) target = $region28
        $region27: #{tpu_custom_call.1} parent=11 // pred_region
          _
        $region28: #{tpu_custom_call.1} parent=11 // pred_fallthru
          _
        // Predicated region
        $region29: #{tpu_custom_call.1} parent=11 // pred_check
          %p224 = pneg %p150
        $region30: #{tpu_custom_call.1} parent=11 // pred_check_branch
          %226 = sbr.rel (%p224) target = $region32
        $region31: #{tpu_custom_call.1} parent=11 // pred_region
          _
        $region32: #{tpu_custom_call.1} parent=11 // pred_fallthru
          _
        // Predicated region
        $region33: #{tpu_custom_call.1} parent=11 // pred_check
          %p227 = pneg %p171
        $region34: #{tpu_custom_call.1} parent=11 // pred_check_branch
          %229 = sbr.rel (%p227) target = $region36
        $region35: #{tpu_custom_call.1} parent=11 // pred_region
          _
        $region36: #{tpu_custom_call.1} parent=11 // pred_fallthru
          _
      $region12: #{tpu_custom_call.1} parent=5 // pred_fallthru
        _
      %p230 = scmp.lt.s32.totalorder %s19, 2
      // Predicated region
      $region37: #{tpu_custom_call.1} parent=5 // pred_check
        %p231 = pneg %p230
      $region38: #{tpu_custom_call.1} parent=5 // pred_check_branch
        %233 = sbr.rel (%p231) target = $region40
      $region39: #{tpu_custom_call.1} parent=5 // pred_region
        // Predicated region
        $region41: #{tpu_custom_call.1} parent=39 // pred_check
          %p234 = pneg %p39
        $region42: #{tpu_custom_call.1} parent=39 // pred_check_branch
          %236 = sbr.rel (%p234) target = $region44
        $region43: #{tpu_custom_call.1} parent=39 // pred_region
          %s237 = sand.u32 %s29, 1
          %s238 = scalar_lea.sflag [#allocation3], %s237
          %s239 = sand.u32 %s29, 1
          %s240 = smul.addr %s239, 8
          %s241 = scalar_lea.vmem [#allocation2], %s240
          %s243 = ssub.s32 128, 128
          %244 = vsyncadd %s238, %s243
          %s245 = smul.addr %s19, 2
          %s246 = smul.addr %s245, 64
          %s247 = scalar_lea.hbm %s0, %s246
          %s249 = sshll.u32 %s241, 4
          %s250 = int_to_ptr.vmem [resolvable:$true] %s249
          %252 = dma.hbm_to_vmem [thread:$0]  %s247, 128, %s250, %s238
        $region44: #{tpu_custom_call.1} parent=39 // pred_fallthru
          _
      $region40: #{tpu_custom_call.1} parent=5 // pred_fallthru
        _
      %p253 = scmp.le.s32.totalorder 1, %s19
      %p254 = scmp.lt.s32.totalorder %s19, 3
      %p255 = pnand %p253, %p254
      %p256 = pneg %p255
      // Predicated region
      $region45: #{tpu_custom_call.1} parent=5 // pred_check
        _
      $region46: #{tpu_custom_call.1} parent=5 // pred_check_branch
        %258 = sbr.rel (%p255) target = $region48
      $region47: #{tpu_custom_call.1} parent=5 // pred_region
        %s259 = ssub.s32 %s19, 1
        %s260 = sand.u32 %s32, 1
        %s261 = scalar_lea.sflag [#allocation3], %s260
        %s262 = sand.u32 %s32, 1
        %s263 = smul.addr %s262, 8
        %s264 = scalar_lea.vmem [#allocation2], %s263
        // Predicated region
        $region49: #{tpu_custom_call.1} parent=47 // pred_check
          %p265 = pneg %p45
        $region50: #{tpu_custom_call.1} parent=47 // pred_check_branch
          %267 = sbr.rel (%p265) target = $region52
        $region51: #{tpu_custom_call.1} parent=47 // pred_region
          %268 = dma.done %s261, 128
        $region52: #{tpu_custom_call.1} parent=47 // pred_fallthru
          _
        %s269 = sand.u32 %s32, 1
        %s270 = scalar_lea.sflag [#allocation3], %s269
        %s271 = sand.u32 %s32, 1
        %s272 = smul.addr %s271, 8
        %s273 = scalar_lea.vmem [#allocation2], %s272
        %p274 = pneg %p45
        %p275 = pneg %p42
        %p276 = pneg %p66
        %p277 = pneg %p63
        %p278 = pneg %p87
        %p279 = pneg %p84
        %p280 = pneg %p108
        %p281 = pneg %p105
        %p282 = pneg %p129
        %p283 = pneg %p126
        %p284 = pneg %p150
        %p285 = pneg %p147
        %p286 = pneg %p171
        %p287 = pneg %p168
        %p288 = pneg %p197
        %p289 = pneg %p194
        %s290 = sand.u32 %s184, 1
        %s291 = scalar_lea.sflag [#allocation4], %s290
        %s292 = sand.u32 %s184, 1
        %s293 = smul.addr %s292, 16
        %s294 = scalar_lea.vmem [#allocation5], %s293
        %v296 = vld [vmem:[%s1] sm:$0xf]
        %v297 = vld [vmem:[%s2] sm:$0xf]
        %v298 = vld [vmem:[%s3] sm:$0xf]
        %v299 = vld [vmem:[%s3 + $0x4] sm:$0xf]
        %v300 = vld [vmem:[%s4] sm:$0xff]
        %v301 = vld [vmem:[%s4 + $0x8] sm:$0xff]
        %v302 = vld [vmem:[%s5] sm:$0x3]
        %v303 = vld [vmem:[%s5 + $0x2] sm:$0x3]
        %v304 = vld [vmem:[%s5 + $0x4] sm:$0x3]
        %v305 = vld [vmem:[%s5 + $0x6] sm:$0x3]
        %v306 = vld [vmem:[%s5 + $0x8] sm:$0x3]
        %v307 = vld [vmem:[%s5 + $0xa] sm:$0x3]
        %v308 = vld [vmem:[%s5 + $0xc] sm:$0x3]
        %v309 = vld [vmem:[%s5 + $0xe] sm:$0x3]
        %v310 = vld [vmem:[%s5 + $0x10] sm:$0x3]
        %v311 = vld [vmem:[%s6] sm:$0xff]
        %v312 = vld [vmem:[%s6 + $0x8] sm:$0xff]
        %v313 = vld [vmem:[%s6 + $0x10] sm:$0x1]
        %v314 = vld [vmem:[%s6 + $0x18] sm:$0x1]
        %v315 = vlaneseq
        %v316 = vshrl.u32 %v315, 7
        %v317 = vsub.s32 0, %v316
        %v318 = vrot.slane %v311, %v317
        %v319 = vlaneseq
        %v320 = vshrl.u32 %v319, 7
        %v321 = vsub.s32 0, %v320
        %v322 = vrot.slane %v312, %v321
        %v323 = vlaneseq
        %v324 = vshrl.u32 %v323, 7
        %v325 = vsub.s32 1, %v324
        %v326 = vrot.slane %v311, %v325
        %v327 = vlaneseq
        %v328 = vshrl.u32 %v327, 7
        %v329 = vsub.s32 1, %v328
        %v330 = vrot.slane %v312, %v329
        %v331 = vlaneseq
        %v332 = vshrl.u32 %v331, 7
        %v333 = vsub.s32 2, %v332
        %v334 = vrot.slane %v311, %v333
        %v335 = vlaneseq
        %v336 = vshrl.u32 %v335, 7
        %v337 = vsub.s32 2, %v336
        %v338 = vrot.slane %v312, %v337
        %v339 = vlaneseq
        %v340 = vshrl.u32 %v339, 7
        %v341 = vsub.s32 3, %v340
        %v342 = vrot.slane %v311, %v341
        %v343 = vlaneseq
        %v344 = vshrl.u32 %v343, 7
        %v345 = vsub.s32 3, %v344
        %v346 = vrot.slane %v312, %v345
        %v347 = vlaneseq
        %v348 = vshrl.u32 %v347, 7
        %v349 = vsub.s32 4, %v348
        %v350 = vrot.slane %v311, %v349
        %v351 = vlaneseq
        %v352 = vshrl.u32 %v351, 7
        %v353 = vsub.s32 4, %v352
        %v354 = vrot.slane %v312, %v353
        %v355 = vlaneseq
        %v356 = vshrl.u32 %v355, 7
        %v357 = vsub.s32 5, %v356
        %v358 = vrot.slane %v311, %v357
        %v359 = vlaneseq
        %v360 = vshrl.u32 %v359, 7
        %v361 = vsub.s32 5, %v360
        %v362 = vrot.slane %v312, %v361
        %v363 = vlaneseq
        %v364 = vshrl.u32 %v363, 7
        %v365 = vsub.s32 6, %v364
        %v366 = vrot.slane %v311, %v365
        %v367 = vlaneseq
        %v368 = vshrl.u32 %v367, 7
        %v369 = vsub.s32 6, %v368
        %v370 = vrot.slane %v312, %v369
        %v371 = vlaneseq
        %v372 = vshrl.u32 %v371, 7
        %v373 = vsub.s32 7, %v372
        %v374 = vrot.slane %v311, %v373
        %v375 = vlaneseq
        %v376 = vshrl.u32 %v375, 7
        %v377 = vsub.s32 7, %v376
        %v378 = vrot.slane %v312, %v377
        %v379 = vlaneseq
        %v380 = vshrl.u32 %v379, 7
        %v381 = vsub.s32 0, %v380
        %v382 = vrot.slane %v313, %v381
        %v383 = vlaneseq
        %v384 = vshrl.u32 %v383, 7
        %v385 = vsub.s32 0, %v384
        %v386 = vrot.slane %v314, %v385
        %v387 = vld [vmem:[%s264] sm:$0xff]
        %389 = vset.pattern.permute.xlu0 0
        %390 = vperm.xlu0 %389, %v296
        %v391 = vpop.permute.xlu0 %390
        %v393 = vunpack.c.l.s4 839922192
        %v394 = vunpack.c.0.s8 %v393
        %v395 = vlaneseq
        %v396 = vshrl.u32 %v395, 7
        %v397 = vsub.s32 %v394, %v396
        %v398 = vrot.slane %v391, %v397
        %v400 = vmul.f32 %v387, %v398
        %402 = vset.pattern.permute.xlu0 0
        %403 = vperm.xlu0 %402, %v297
        %v404 = vpop.permute.xlu0 %403
        %v406 = vunpack.c.l.s4 839922192
        %v407 = vunpack.c.0.s8 %v406
        %v408 = vlaneseq
        %v409 = vshrl.u32 %v408, 7
        %v410 = vsub.s32 %v407, %v409
        %v411 = vrot.slane %v404, %v410
        %v413 = vadd.f32 %v400, %v411
        %v414 = vmax.f32 %v413, 0.0
        %v416 = vcombine.high %v414, %v414
        %v418 = vpack.c.bf16 %v414, %v414
        %v419 = vpack.c.bf16 %v416, %v416
        %421 = vset.pattern.permute.xlu0 0
        %422 = vperm.xlu0 %421, %v300
        %v423 = vpop.permute.xlu0 %422
        %426 = vset.pattern.permute.xlu0 0
        %427 = vperm.xlu0 %426, %v301
        %v428 = vpop.permute.xlu0 %427
        %v432 = vunpack.c.l.b16 %v298
        %v433 = vunpack.c.l.b16 %v299
        %v434 = vpack.c.b16 %v433, %v432
        %vm435 = vcmask 31744
        %v437 = vsel %vm435, %v434, 0
        %vm439 = vcmask 1041408
        %v441 = vsel %vm439, %v418, 0
        %v444 = vsel %vm439, %v419, 0
        %446 = vmatprep.subr.bf16.mxu0 %v444
        %447 = vmatpush1.bf16.msra.mxu0 %v441
        %448 = vmatprep.subr.bf16.mxu0 0
        %449 = vmatpush1.bf16.msra.mxu0 0
        %450 = vmatprep.subr.bf16.mxu0 0
        %451 = vmatpush1.bf16.msra.mxu0 0
        %452 = vmatprep.subr.bf16.mxu0 0
        %453 = vmatpush1.bf16.msra.mxu0 0
        %454 = vmatprep.subr.bf16.mxu0 0
        %455 = vmatpush1.bf16.msra.mxu0 0
        %456 = vmatprep.subr.bf16.mxu0 0
        %457 = vmatpush1.bf16.msra.mxu0 0
        %458 = vmatprep.subr.bf16.mxu0 0
        %459 = vmatpush1.bf16.msra.mxu0 0
        %460 = vmatprep.subr.bf16.mxu0 0
        %461 = vmatpush1.bf16.msra.mxu0 0
        %462 = vmatprep.subr.bf16.mxu0 0
        %463 = vmatpush1.bf16.msra.mxu0 0
        %464 = vmatprep.subr.bf16.mxu0 0
        %465 = vmatpush1.bf16.msra.mxu0 0
        %466 = vmatprep.subr.bf16.mxu0 0
        %467 = vmatpush1.bf16.msra.mxu0 0
        %468 = vmatprep.subr.bf16.mxu0 0
        %469 = vmatpush1.bf16.msra.mxu0 0
        %470 = vmatprep.subr.bf16.mxu0 0
        %471 = vmatpush1.bf16.msra.mxu0 0
        %472 = vmatprep.subr.bf16.mxu0 0
        %473 = vmatpush1.bf16.msra.mxu0 0
        %474 = vmatprep.subr.bf16.mxu0 0
        %475 = vmatpush1.bf16.msra.mxu0 0
        %476 = vmatprep.subr.bf16.mxu0 0
        %477 = vmatpush1.bf16.msra.mxu0 0
        %478 = vmatprep.mubr.bf16.mxu0 0
        %479 = vmatmul.mubr.bf16.gmra.mrb[0].mxu0 %v437
        %v480 = vpop.f32.mrb[0].mxu0
        %v481 = vadd.f32 %v423, %v480
        %v482 = vpop.f32.mrb[0].mxu0
        %v483 = vadd.f32 %v423, %v482
        %v484 = vpop.f32.mrb[0].mxu0
        %v485 = vadd.f32 %v428, %v484
        %v486 = vpop.f32.mrb[0].mxu0
        %v487 = vadd.f32 %v428, %v486
        %488 = vdwg.mxu0
        %v489 = vmax.f32 %v481, 0.0
        %v490 = vmax.f32 %v483, 0.0
        %v491 = vmax.f32 %v485, 0.0
        %v492 = vmax.f32 %v487, 0.0
        %493 = vrot.lane.b32.xlu0 %v489, 17
        %v494 = vpop.permute.xlu0 %493
        %495 = vrot.lane.b32.xlu0 %v491, 17
        %v496 = vpop.permute.xlu0 %495
        %497 = vrot.lane.b32.xlu0 %v490, 17
        %v498 = vpop.permute.xlu0 %497
        %499 = vrot.lane.b32.xlu0 %v492, 17
        %v500 = vpop.permute.xlu0 %499
        %v501 = vlaneseq
        %v502 = vand.u32 %v501, 127
        %vm503 = vcmp.lt.s32.totalorder %v502, 17
        %v504 = vsel %vm503, %v494, %v498
        %v505 = vsel %vm503, %v496, %v500
        %v506 = vsel %vm503, %v498, %v494
        %v507 = vsel %vm503, %v500, %v496
        %v508 = vmul.f32 %v506, %v318
        %v509 = vmul.f32 %v504, %v322
        %v510 = vmul.f32 %v507, %v318
        %v511 = vmul.f32 %v505, %v322
        %v512 = vpack.c.bf16 %v510, %v508
        %v513 = vpack.c.bf16 %v511, %v509
        %514 = vrot.lane.b32.xlu0 %v489, 16
        %v515 = vpop.permute.xlu0 %514
        %516 = vrot.lane.b32.xlu0 %v491, 16
        %v517 = vpop.permute.xlu0 %516
        %518 = vrot.lane.b32.xlu0 %v490, 16
        %v519 = vpop.permute.xlu0 %518
        %520 = vrot.lane.b32.xlu0 %v492, 16
        %v521 = vpop.permute.xlu0 %520
        %vm522 = vcmp.lt.s32.totalorder %v502, 16
        %v523 = vsel %vm522, %v515, %v519
        %v524 = vsel %vm522, %v517, %v521
        %v525 = vsel %vm522, %v519, %v515
        %v526 = vsel %vm522, %v521, %v517
        %v527 = vmul.f32 %v525, %v326
        %v528 = vmul.f32 %v523, %v330
        %v529 = vmul.f32 %v526, %v326
        %v530 = vmul.f32 %v524, %v330
        %v531 = vpack.c.bf16 %v529, %v527
        %v532 = vpack.c.bf16 %v530, %v528
        %vm533 = vcmask 130048
        %v535 = vsel %vm533, %v303, 0
        %537 = vmatprep.subr.bf16.mxu0 %v532
        %538 = vmatpush1.bf16.msra.mxu0 %v531
        %539 = vmatprep.subr.bf16.mxu0 0
        %540 = vmatpush1.bf16.msra.mxu0 0
        %541 = vmatprep.subr.bf16.mxu0 0
        %542 = vmatpush1.bf16.msra.mxu0 0
        %543 = vmatprep.subr.bf16.mxu0 0
        %544 = vmatpush1.bf16.msra.mxu0 0
        %545 = vmatprep.subr.bf16.mxu0 0
        %546 = vmatpush1.bf16.msra.mxu0 0
        %547 = vmatprep.subr.bf16.mxu0 0
        %548 = vmatpush1.bf16.msra.mxu0 0
        %549 = vmatprep.subr.bf16.mxu0 0
        %550 = vmatpush1.bf16.msra.mxu0 0
        %551 = vmatprep.subr.bf16.mxu0 0
        %552 = vmatpush1.bf16.msra.mxu0 0
        %553 = vmatprep.subr.bf16.mxu0 0
        %554 = vmatpush1.bf16.msra.mxu0 0
        %555 = vmatprep.subr.bf16.mxu0 0
        %556 = vmatpush1.bf16.msra.mxu0 0
        %557 = vmatprep.subr.bf16.mxu0 0
        %558 = vmatpush1.bf16.msra.mxu0 0
        %559 = vmatprep.subr.bf16.mxu0 0
        %560 = vmatpush1.bf16.msra.mxu0 0
        %561 = vmatprep.subr.bf16.mxu0 0
        %562 = vmatpush1.bf16.msra.mxu0 0
        %563 = vmatprep.subr.bf16.mxu0 0
        %564 = vmatpush1.bf16.msra.mxu0 0
        %565 = vmatprep.subr.bf16.mxu0 0
        %566 = vmatpush1.bf16.msra.mxu0 0
        %567 = vmatprep.subr.bf16.mxu0 0
        %568 = vmatpush1.bf16.msra.mxu0 0
        %569 = vmatprep.mubr.bf16.mxu0 0
        %570 = vmatmul.mubr.bf16.gmra.mrb[0].mxu0 %v535
        %v571 = vpop.f32.mrb[0].mxu0
        %v572 = vadd.f32 0.0, %v571
        %v573 = vpop.f32.mrb[0].mxu0
        %v574 = vadd.f32 0.0, %v573
        %v575 = vpop.f32.mrb[0].mxu0
        %v576 = vpop.f32.mrb[0].mxu0
        %577 = vdwg.mxu0
        %v579 = vsel %vm533, %v302, 0
        %581 = vmatprep.subr.bf16.mxu0 %v513
        %582 = vmatpush1.bf16.msra.mxu0 %v512
        %583 = vmatprep.subr.bf16.mxu0 0
        %584 = vmatpush1.bf16.msra.mxu0 0
        %585 = vmatprep.subr.bf16.mxu0 0
        %586 = vmatpush1.bf16.msra.mxu0 0
        %587 = vmatprep.subr.bf16.mxu0 0
        %588 = vmatpush1.bf16.msra.mxu0 0
        %589 = vmatprep.subr.bf16.mxu0 0
        %590 = vmatpush1.bf16.msra.mxu0 0
        %591 = vmatprep.subr.bf16.mxu0 0
        %592 = vmatpush1.bf16.msra.mxu0 0
        %593 = vmatprep.subr.bf16.mxu0 0
        %594 = vmatpush1.bf16.msra.mxu0 0
        %595 = vmatprep.subr.bf16.mxu0 0
        %596 = vmatpush1.bf16.msra.mxu0 0
        %597 = vmatprep.subr.bf16.mxu0 0
        %598 = vmatpush1.bf16.msra.mxu0 0
        %599 = vmatprep.subr.bf16.mxu0 0
        %600 = vmatpush1.bf16.msra.mxu0 0
        %601 = vmatprep.subr.bf16.mxu0 0
        %602 = vmatpush1.bf16.msra.mxu0 0
        %603 = vmatprep.subr.bf16.mxu0 0
        %604 = vmatpush1.bf16.msra.mxu0 0
        %605 = vmatprep.subr.bf16.mxu0 0
        %606 = vmatpush1.bf16.msra.mxu0 0
        %607 = vmatprep.subr.bf16.mxu0 0
        %608 = vmatpush1.bf16.msra.mxu0 0
        %609 = vmatprep.subr.bf16.mxu0 0
        %610 = vmatpush1.bf16.msra.mxu0 0
        %611 = vmatprep.subr.bf16.mxu0 0
        %612 = vmatpush1.bf16.msra.mxu0 0
        %613 = vmatprep.mubr.bf16.mxu0 0
        %614 = vmatmul.mubr.bf16.gmra.mrb[0].mxu0 %v579
        %v615 = vpop.f32.mrb[0].mxu0
        %v616 = vadd.f32 %v572, %v615
        %v617 = vpop.f32.mrb[0].mxu0
        %v618 = vadd.f32 %v574, %v617
        %v619 = vpop.f32.mrb[0].mxu0
        %v620 = vpop.f32.mrb[0].mxu0
        %621 = vdwg.mxu0
        %622 = vrot.lane.b32.xlu0 %v489, 15
        %v623 = vpop.permute.xlu0 %622
        %624 = vrot.lane.b32.xlu0 %v491, 15
        %v625 = vpop.permute.xlu0 %624
        %626 = vrot.lane.b32.xlu0 %v490, 15
        %v627 = vpop.permute.xlu0 %626
        %628 = vrot.lane.b32.xlu0 %v492, 15
        %v629 = vpop.permute.xlu0 %628
        %vm630 = vcmp.lt.s32.totalorder %v502, 15
        %v631 = vsel %vm630, %v623, %v627
        %v632 = vsel %vm630, %v625, %v629
        %v633 = vsel %vm630, %v627, %v623
        %v634 = vsel %vm630, %v629, %v625
        %v635 = vmul.f32 %v633, %v334
        %v636 = vmul.f32 %v631, %v338
        %v637 = vmul.f32 %v634, %v334
        %v638 = vmul.f32 %v632, %v338
        %v639 = vpack.c.bf16 %v637, %v635
        %v640 = vpack.c.bf16 %v638, %v636
        %v642 = vsel %vm533, %v304, 0
        %644 = vmatprep.subr.bf16.mxu0 %v640
        %645 = vmatpush1.bf16.msra.mxu0 %v639
        %646 = vmatprep.subr.bf16.mxu0 0
        %647 = vmatpush1.bf16.msra.mxu0 0
        %648 = vmatprep.subr.bf16.mxu0 0
        %649 = vmatpush1.bf16.msra.mxu0 0
        %650 = vmatprep.subr.bf16.mxu0 0
        %651 = vmatpush1.bf16.msra.mxu0 0
        %652 = vmatprep.subr.bf16.mxu0 0
        %653 = vmatpush1.bf16.msra.mxu0 0
        %654 = vmatprep.subr.bf16.mxu0 0
        %655 = vmatpush1.bf16.msra.mxu0 0
        %656 = vmatprep.subr.bf16.mxu0 0
        %657 = vmatpush1.bf16.msra.mxu0 0
        %658 = vmatprep.subr.bf16.mxu0 0
        %659 = vmatpush1.bf16.msra.mxu0 0
        %660 = vmatprep.subr.bf16.mxu0 0
        %661 = vmatpush1.bf16.msra.mxu0 0
        %662 = vmatprep.subr.bf16.mxu0 0
        %663 = vmatpush1.bf16.msra.mxu0 0
        %664 = vmatprep.subr.bf16.mxu0 0
        %665 = vmatpush1.bf16.msra.mxu0 0
        %666 = vmatprep.subr.bf16.mxu0 0
        %667 = vmatpush1.bf16.msra.mxu0 0
        %668 = vmatprep.subr.bf16.mxu0 0
        %669 = vmatpush1.bf16.msra.mxu0 0
        %670 = vmatprep.subr.bf16.mxu0 0
        %671 = vmatpush1.bf16.msra.mxu0 0
        %672 = vmatprep.subr.bf16.mxu0 0
        %673 = vmatpush1.bf16.msra.mxu0 0
        %674 = vmatprep.subr.bf16.mxu0 0
        %675 = vmatpush1.bf16.msra.mxu0 0
        %676 = vmatprep.mubr.bf16.mxu0 0
        %677 = vmatmul.mubr.bf16.gmra.mrb[0].mxu0 %v642
        %v678 = vpop.f32.mrb[0].mxu0
        %v679 = vadd.f32 0.0, %v678
        %v680 = vpop.f32.mrb[0].mxu0
        %v681 = vadd.f32 0.0, %v680
        %v682 = vpop.f32.mrb[0].mxu0
        %v683 = vpop.f32.mrb[0].mxu0
        %684 = vdwg.mxu0
        %v685 = vadd.f32 %v616, %v679
        %v686 = vadd.f32 %v618, %v681
        %687 = vrot.lane.b32.xlu0 %v489, 1
        %v688 = vpop.permute.xlu0 %687
        %689 = vrot.lane.b32.xlu0 %v491, 1
        %v690 = vpop.permute.xlu0 %689
        %691 = vrot.lane.b32.xlu0 %v490, 1
        %v692 = vpop.permute.xlu0 %691
        %693 = vrot.lane.b32.xlu0 %v492, 1
        %v694 = vpop.permute.xlu0 %693
        %vm695 = vcmp.lt.s32.totalorder %v502, 1
        %v696 = vsel %vm695, %v688, %v692
        %v697 = vsel %vm695, %v690, %v694
        %v698 = vsel %vm695, %v692, %v688
        %v699 = vsel %vm695, %v694, %v690
        %v700 = vmul.f32 %v698, %v342
        %v701 = vmul.f32 %v696, %v346
        %v702 = vmul.f32 %v699, %v342
        %v703 = vmul.f32 %v697, %v346
        %v704 = vpack.c.bf16 %v702, %v700
        %v705 = vpack.c.bf16 %v703, %v701
        %v707 = vsel %vm533, %v305, 0
        %709 = vmatprep.subr.bf16.mxu0 %v705
        %710 = vmatpush1.bf16.msra.mxu0 %v704
        %711 = vmatprep.subr.bf16.mxu0 0
        %712 = vmatpush1.bf16.msra.mxu0 0
        %713 = vmatprep.subr.bf16.mxu0 0
        %714 = vmatpush1.bf16.msra.mxu0 0
        %715 = vmatprep.subr.bf16.mxu0 0
        %716 = vmatpush1.bf16.msra.mxu0 0
        %717 = vmatprep.subr.bf16.mxu0 0
        %718 = vmatpush1.bf16.msra.mxu0 0
        %719 = vmatprep.subr.bf16.mxu0 0
        %720 = vmatpush1.bf16.msra.mxu0 0
        %721 = vmatprep.subr.bf16.mxu0 0
        %722 = vmatpush1.bf16.msra.mxu0 0
        %723 = vmatprep.subr.bf16.mxu0 0
        %724 = vmatpush1.bf16.msra.mxu0 0
        %725 = vmatprep.subr.bf16.mxu0 0
        %726 = vmatpush1.bf16.msra.mxu0 0
        %727 = vmatprep.subr.bf16.mxu0 0
        %728 = vmatpush1.bf16.msra.mxu0 0
        %729 = vmatprep.subr.bf16.mxu0 0
        %730 = vmatpush1.bf16.msra.mxu0 0
        %731 = vmatprep.subr.bf16.mxu0 0
        %732 = vmatpush1.bf16.msra.mxu0 0
        %733 = vmatprep.subr.bf16.mxu0 0
        %734 = vmatpush1.bf16.msra.mxu0 0
        %735 = vmatprep.subr.bf16.mxu0 0
        %736 = vmatpush1.bf16.msra.mxu0 0
        %737 = vmatprep.subr.bf16.mxu0 0
        %738 = vmatpush1.bf16.msra.mxu0 0
        %739 = vmatprep.subr.bf16.mxu0 0
        %740 = vmatpush1.bf16.msra.mxu0 0
        %741 = vmatprep.mubr.bf16.mxu0 0
        %742 = vmatmul.mubr.bf16.gmra.mrb[0].mxu0 %v707
        %v743 = vpop.f32.mrb[0].mxu0
        %v744 = vadd.f32 0.0, %v743
        %v745 = vpop.f32.mrb[0].mxu0
        %v746 = vadd.f32 0.0, %v745
        %v747 = vpop.f32.mrb[0].mxu0
        %v748 = vpop.f32.mrb[0].mxu0
        %749 = vdwg.mxu0
        %v750 = vadd.f32 %v685, %v744
        %v751 = vadd.f32 %v686, %v746
        %v752 = vmul.f32 %v489, %v350
        %v753 = vmul.f32 %v490, %v354
        %v754 = vmul.f32 %v491, %v350
        %v755 = vmul.f32 %v492, %v354
        %v756 = vpack.c.bf16 %v754, %v752
        %v757 = vpack.c.bf16 %v755, %v753
        %v759 = vsel %vm533, %v306, 0
        %761 = vmatprep.subr.bf16.mxu0 %v757
        %762 = vmatpush1.bf16.msra.mxu0 %v756
        %763 = vmatprep.subr.bf16.mxu0 0
        %764 = vmatpush1.bf16.msra.mxu0 0
        %765 = vmatprep.subr.bf16.mxu0 0
        %766 = vmatpush1.bf16.msra.mxu0 0
        %767 = vmatprep.subr.bf16.mxu0 0
        %768 = vmatpush1.bf16.msra.mxu0 0
        %769 = vmatprep.subr.bf16.mxu0 0
        %770 = vmatpush1.bf16.msra.mxu0 0
        %771 = vmatprep.subr.bf16.mxu0 0
        %772 = vmatpush1.bf16.msra.mxu0 0
        %773 = vmatprep.subr.bf16.mxu0 0
        %774 = vmatpush1.bf16.msra.mxu0 0
        %775 = vmatprep.subr.bf16.mxu0 0
        %776 = vmatpush1.bf16.msra.mxu0 0
        %777 = vmatprep.subr.bf16.mxu0 0
        %778 = vmatpush1.bf16.msra.mxu0 0
        %779 = vmatprep.subr.bf16.mxu0 0
        %780 = vmatpush1.bf16.msra.mxu0 0
        %781 = vmatprep.subr.bf16.mxu0 0
        %782 = vmatpush1.bf16.msra.mxu0 0
        %783 = vmatprep.subr.bf16.mxu0 0
        %784 = vmatpush1.bf16.msra.mxu0 0
        %785 = vmatprep.subr.bf16.mxu0 0
        %786 = vmatpush1.bf16.msra.mxu0 0
        %787 = vmatprep.subr.bf16.mxu0 0
        %788 = vmatpush1.bf16.msra.mxu0 0
        %789 = vmatprep.subr.bf16.mxu0 0
        %790 = vmatpush1.bf16.msra.mxu0 0
        %791 = vmatprep.subr.bf16.mxu0 0
        %792 = vmatpush1.bf16.msra.mxu0 0
        %793 = vmatprep.mubr.bf16.mxu0 0
        %794 = vmatmul.mubr.bf16.gmra.mrb[0].mxu0 %v759
        %v795 = vpop.f32.mrb[0].mxu0
        %v796 = vadd.f32 0.0, %v795
        %v797 = vpop.f32.mrb[0].mxu0
        %v798 = vadd.f32 0.0, %v797
        %v799 = vpop.f32.mrb[0].mxu0
        %v800 = vpop.f32.mrb[0].mxu0
        %801 = vdwg.mxu0
        %v802 = vadd.f32 %v750, %v796
        %v803 = vadd.f32 %v751, %v798
        %804 = vrot.lane.b32.xlu0 %v489, 127
        %v805 = vpop.permute.xlu0 %804
        %806 = vrot.lane.b32.xlu0 %v491, 127
        %v807 = vpop.permute.xlu0 %806
        %808 = vrot.lane.b32.xlu0 %v490, 127
        %v809 = vpop.permute.xlu0 %808
        %810 = vrot.lane.b32.xlu0 %v492, 127
        %v811 = vpop.permute.xlu0 %810
        %vm812 = vcmp.lt.s32.totalorder %v502, 127
        %v813 = vsel %vm812, %v805, %v809
        %v814 = vsel %vm812, %v807, %v811
        %v815 = vsel %vm812, %v809, %v805
        %v816 = vsel %vm812, %v811, %v807
        %v817 = vmul.f32 %v813, %v358
        %v818 = vmul.f32 %v815, %v362
        %v819 = vmul.f32 %v814, %v358
        %v820 = vmul.f32 %v816, %v362
        %v821 = vpack.c.bf16 %v819, %v817
        %v822 = vpack.c.bf16 %v820, %v818
        %v824 = vsel %vm533, %v307, 0
        %826 = vmatprep.subr.bf16.mxu0 %v822
        %827 = vmatpush1.bf16.msra.mxu0 %v821
        %828 = vmatprep.subr.bf16.mxu0 0
        %829 = vmatpush1.bf16.msra.mxu0 0
        %830 = vmatprep.subr.bf16.mxu0 0
        %831 = vmatpush1.bf16.msra.mxu0 0
        %832 = vmatprep.subr.bf16.mxu0 0
        %833 = vmatpush1.bf16.msra.mxu0 0
        %834 = vmatprep.subr.bf16.mxu0 0
        %835 = vmatpush1.bf16.msra.mxu0 0
        %836 = vmatprep.subr.bf16.mxu0 0
        %837 = vmatpush1.bf16.msra.mxu0 0
        %838 = vmatprep.subr.bf16.mxu0 0
        %839 = vmatpush1.bf16.msra.mxu0 0
        %840 = vmatprep.subr.bf16.mxu0 0
        %841 = vmatpush1.bf16.msra.mxu0 0
        %842 = vmatprep.subr.bf16.mxu0 0
        %843 = vmatpush1.bf16.msra.mxu0 0
        %844 = vmatprep.subr.bf16.mxu0 0
        %845 = vmatpush1.bf16.msra.mxu0 0
        %846 = vmatprep.subr.bf16.mxu0 0
        %847 = vmatpush1.bf16.msra.mxu0 0
        %848 = vmatprep.subr.bf16.mxu0 0
        %849 = vmatpush1.bf16.msra.mxu0 0
        %850 = vmatprep.subr.bf16.mxu0 0
        %851 = vmatpush1.bf16.msra.mxu0 0
        %852 = vmatprep.subr.bf16.mxu0 0
        %853 = vmatpush1.bf16.msra.mxu0 0
        %854 = vmatprep.subr.bf16.mxu0 0
        %855 = vmatpush1.bf16.msra.mxu0 0
        %856 = vmatprep.subr.bf16.mxu0 0
        %857 = vmatpush1.bf16.msra.mxu0 0
        %858 = vmatprep.mubr.bf16.mxu0 0
        %859 = vmatmul.mubr.bf16.gmra.mrb[0].mxu0 %v824
        %v860 = vpop.f32.mrb[0].mxu0
        %v861 = vadd.f32 0.0, %v860
        %v862 = vpop.f32.mrb[0].mxu0
        %v863 = vadd.f32 0.0, %v862
        %v864 = vpop.f32.mrb[0].mxu0
        %v865 = vpop.f32.mrb[0].mxu0
        %866 = vdwg.mxu0
        %v867 = vadd.f32 %v802, %v861
        %v868 = vadd.f32 %v803, %v863
        %869 = vrot.lane.b32.xlu0 %v489, 113
        %v870 = vpop.permute.xlu0 %869
        %871 = vrot.lane.b32.xlu0 %v491, 113
        %v872 = vpop.permute.xlu0 %871
        %873 = vrot.lane.b32.xlu0 %v490, 113
        %v874 = vpop.permute.xlu0 %873
        %875 = vrot.lane.b32.xlu0 %v492, 113
        %v876 = vpop.permute.xlu0 %875
        %vm877 = vcmp.lt.s32.totalorder %v502, 113
        %v878 = vsel %vm877, %v870, %v874
        %v879 = vsel %vm877, %v872, %v876
        %v880 = vsel %vm877, %v874, %v870
        %v881 = vsel %vm877, %v876, %v872
        %v882 = vmul.f32 %v878, %v366
        %v883 = vmul.f32 %v880, %v370
        %v884 = vmul.f32 %v879, %v366
        %v885 = vmul.f32 %v881, %v370
        %v886 = vpack.c.bf16 %v884, %v882
        %v887 = vpack.c.bf16 %v885, %v883
        %v889 = vsel %vm533, %v308, 0
        %891 = vmatprep.subr.bf16.mxu0 %v887
        %892 = vmatpush1.bf16.msra.mxu0 %v886
        %893 = vmatprep.subr.bf16.mxu0 0
        %894 = vmatpush1.bf16.msra.mxu0 0
        %895 = vmatprep.subr.bf16.mxu0 0
        %896 = vmatpush1.bf16.msra.mxu0 0
        %897 = vmatprep.subr.bf16.mxu0 0
        %898 = vmatpush1.bf16.msra.mxu0 0
        %899 = vmatprep.subr.bf16.mxu0 0
        %900 = vmatpush1.bf16.msra.mxu0 0
        %901 = vmatprep.subr.bf16.mxu0 0
        %902 = vmatpush1.bf16.msra.mxu0 0
        %903 = vmatprep.subr.bf16.mxu0 0
        %904 = vmatpush1.bf16.msra.mxu0 0
        %905 = vmatprep.subr.bf16.mxu0 0
        %906 = vmatpush1.bf16.msra.mxu0 0
        %907 = vmatprep.subr.bf16.mxu0 0
        %908 = vmatpush1.bf16.msra.mxu0 0
        %909 = vmatprep.subr.bf16.mxu0 0
        %910 = vmatpush1.bf16.msra.mxu0 0
        %911 = vmatprep.subr.bf16.mxu0 0
        %912 = vmatpush1.bf16.msra.mxu0 0
        %913 = vmatprep.subr.bf16.mxu0 0
        %914 = vmatpush1.bf16.msra.mxu0 0
        %915 = vmatprep.subr.bf16.mxu0 0
        %916 = vmatpush1.bf16.msra.mxu0 0
        %917 = vmatprep.subr.bf16.mxu0 0
        %918 = vmatpush1.bf16.msra.mxu0 0
        %919 = vmatprep.subr.bf16.mxu0 0
        %920 = vmatpush1.bf16.msra.mxu0 0
        %921 = vmatprep.subr.bf16.mxu0 0
        %922 = vmatpush1.bf16.msra.mxu0 0
        %923 = vmatprep.mubr.bf16.mxu0 0
        %924 = vmatmul.mubr.bf16.gmra.mrb[0].mxu0 %v889
        %v925 = vpop.f32.mrb[0].mxu0
        %v926 = vadd.f32 0.0, %v925
        %v927 = vpop.f32.mrb[0].mxu0
        %v928 = vadd.f32 0.0, %v927
        %v929 = vpop.f32.mrb[0].mxu0
        %v930 = vpop.f32.mrb[0].mxu0
        %931 = vdwg.mxu0
        %v932 = vadd.f32 %v867, %v926
        %v933 = vadd.f32 %v868, %v928
        %934 = vrot.lane.b32.xlu0 %v489, 112
        %v935 = vpop.permute.xlu0 %934
        %936 = vrot.lane.b32.xlu0 %v491, 112
        %v937 = vpop.permute.xlu0 %936
        %938 = vrot.lane.b32.xlu0 %v490, 112
        %v939 = vpop.permute.xlu0 %938
        %940 = vrot.lane.b32.xlu0 %v492, 112
        %v941 = vpop.permute.xlu0 %940
        %vm942 = vcmp.lt.s32.totalorder %v502, 112
        %v943 = vsel %vm942, %v935, %v939
        %v944 = vsel %vm942, %v937, %v941
        %v945 = vsel %vm942, %v939, %v935
        %v946 = vsel %vm942, %v941, %v937
        %v947 = vmul.f32 %v943, %v374
        %v948 = vmul.f32 %v945, %v378
        %v949 = vmul.f32 %v944, %v374
        %v950 = vmul.f32 %v946, %v378
        %v951 = vpack.c.bf16 %v949, %v947
        %v952 = vpack.c.bf16 %v950, %v948
        %v954 = vsel %vm533, %v309, 0
        %956 = vmatprep.subr.bf16.mxu0 %v952
        %957 = vmatpush1.bf16.msra.mxu0 %v951
        %958 = vmatprep.subr.bf16.mxu0 0
        %959 = vmatpush1.bf16.msra.mxu0 0
        %960 = vmatprep.subr.bf16.mxu0 0
        %961 = vmatpush1.bf16.msra.mxu0 0
        %962 = vmatprep.subr.bf16.mxu0 0
        %963 = vmatpush1.bf16.msra.mxu0 0
        %964 = vmatprep.subr.bf16.mxu0 0
        %965 = vmatpush1.bf16.msra.mxu0 0
        %966 = vmatprep.subr.bf16.mxu0 0
        %967 = vmatpush1.bf16.msra.mxu0 0
        %968 = vmatprep.subr.bf16.mxu0 0
        %969 = vmatpush1.bf16.msra.mxu0 0
        %970 = vmatprep.subr.bf16.mxu0 0
        %971 = vmatpush1.bf16.msra.mxu0 0
        %972 = vmatprep.subr.bf16.mxu0 0
        %973 = vmatpush1.bf16.msra.mxu0 0
        %974 = vmatprep.subr.bf16.mxu0 0
        %975 = vmatpush1.bf16.msra.mxu0 0
        %976 = vmatprep.subr.bf16.mxu0 0
        %977 = vmatpush1.bf16.msra.mxu0 0
        %978 = vmatprep.subr.bf16.mxu0 0
        %979 = vmatpush1.bf16.msra.mxu0 0
        %980 = vmatprep.subr.bf16.mxu0 0
        %981 = vmatpush1.bf16.msra.mxu0 0
        %982 = vmatprep.subr.bf16.mxu0 0
        %983 = vmatpush1.bf16.msra.mxu0 0
        %984 = vmatprep.subr.bf16.mxu0 0
        %985 = vmatpush1.bf16.msra.mxu0 0
        %986 = vmatprep.subr.bf16.mxu0 0
        %987 = vmatpush1.bf16.msra.mxu0 0
        %988 = vmatprep.mubr.bf16.mxu0 0
        %989 = vmatmul.mubr.bf16.gmra.mrb[0].mxu0 %v954
        %v990 = vpop.f32.mrb[0].mxu0
        %v991 = vadd.f32 0.0, %v990
        %v992 = vpop.f32.mrb[0].mxu0
        %v993 = vadd.f32 0.0, %v992
        %v994 = vpop.f32.mrb[0].mxu0
        %v995 = vpop.f32.mrb[0].mxu0
        %996 = vdwg.mxu0
        %v997 = vadd.f32 %v932, %v991
        %v998 = vadd.f32 %v933, %v993
        %999 = vrot.lane.b32.xlu0 %v489, 111
        %v1000 = vpop.permute.xlu0 %999
        %1001 = vrot.lane.b32.xlu0 %v491, 111
        %v1002 = vpop.permute.xlu0 %1001
        %1003 = vrot.lane.b32.xlu0 %v490, 111
        %v1004 = vpop.permute.xlu0 %1003
        %1005 = vrot.lane.b32.xlu0 %v492, 111
        %v1006 = vpop.permute.xlu0 %1005
        %vm1007 = vcmp.lt.s32.totalorder %v502, 111
        %v1008 = vsel %vm1007, %v1000, %v1004
        %v1009 = vsel %vm1007, %v1002, %v1006
        %v1010 = vsel %vm1007, %v1004, %v1000
        %v1011 = vsel %vm1007, %v1006, %v1002
        %v1012 = vmul.f32 %v1008, %v382
        %v1013 = vmul.f32 %v1010, %v386
        %v1014 = vmul.f32 %v1009, %v382
        %v1015 = vmul.f32 %v1011, %v386
        %v1016 = vpack.c.bf16 %v1014, %v1012
        %v1017 = vpack.c.bf16 %v1015, %v1013
        %v1019 = vsel %vm533, %v310, 0
        %1021 = vmatprep.subr.bf16.mxu0 %v1017
        %1022 = vmatpush1.bf16.msra.mxu0 %v1016
        %1023 = vmatprep.subr.bf16.mxu0 0
        %1024 = vmatpush1.bf16.msra.mxu0 0
        %1025 = vmatprep.subr.bf16.mxu0 0
        %1026 = vmatpush1.bf16.msra.mxu0 0
        %1027 = vmatprep.subr.bf16.mxu0 0
        %1028 = vmatpush1.bf16.msra.mxu0 0
        %1029 = vmatprep.subr.bf16.mxu0 0
        %1030 = vmatpush1.bf16.msra.mxu0 0
        %1031 = vmatprep.subr.bf16.mxu0 0
        %1032 = vmatpush1.bf16.msra.mxu0 0
        %1033 = vmatprep.subr.bf16.mxu0 0
        %1034 = vmatpush1.bf16.msra.mxu0 0
        %1035 = vmatprep.subr.bf16.mxu0 0
        %1036 = vmatpush1.bf16.msra.mxu0 0
        %1037 = vmatprep.subr.bf16.mxu0 0
        %1038 = vmatpush1.bf16.msra.mxu0 0
        %1039 = vmatprep.subr.bf16.mxu0 0
        %1040 = vmatpush1.bf16.msra.mxu0 0
        %1041 = vmatprep.subr.bf16.mxu0 0
        %1042 = vmatpush1.bf16.msra.mxu0 0
        %1043 = vmatprep.subr.bf16.mxu0 0
        %1044 = vmatpush1.bf16.msra.mxu0 0
        %1045 = vmatprep.subr.bf16.mxu0 0
        %1046 = vmatpush1.bf16.msra.mxu0 0
        %1047 = vmatprep.subr.bf16.mxu0 0
        %1048 = vmatpush1.bf16.msra.mxu0 0
        %1049 = vmatprep.subr.bf16.mxu0 0
        %1050 = vmatpush1.bf16.msra.mxu0 0
        %1051 = vmatprep.subr.bf16.mxu0 0
        %1052 = vmatpush1.bf16.msra.mxu0 0
        %1053 = vmatprep.mubr.bf16.mxu0 0
        %1054 = vmatmul.mubr.bf16.gmra.mrb[0].mxu0 %v1019
        %v1055 = vpop.f32.mrb[0].mxu0
        %v1056 = vadd.f32 0.0, %v1055
        %v1057 = vpop.f32.mrb[0].mxu0
        %v1058 = vadd.f32 0.0, %v1057
        %v1059 = vpop.f32.mrb[0].mxu0
        %v1060 = vpop.f32.mrb[0].mxu0
        %1061 = vdwg.mxu0
        %v1062 = vadd.f32 %v997, %v1056
        %v1063 = vadd.f32 %v998, %v1058
        %v1065 = vcombine.high %v387, %v387
        %1067 = vst [vmem:[%s294] sm:$0xf] %v387
        %1068 = vst [vmem:[%s294 + $0x8] sm:$0xf] %v1065
        %v1071 = vrot.slane %v1062, 4
        %v1072 = vrot.slane %v1063, 4
        %1075 = vst [vmem:[%s294] sm:$0xf0] %v1071
        %1076 = vst [vmem:[%s294 + $0x8] sm:$0xf0] %v1072
        %s1077 = sand.u32 %s184, 1
        %s1078 = scalar_lea.sflag [#allocation4], %s1077
        %s1079 = sand.u32 %s184, 1
        %s1080 = smul.addr %s1079, 16
        %s1081 = scalar_lea.vmem [#allocation5], %s1080
        // Predicated region
        $region53: #{tpu_custom_call.1} parent=47 // pred_check
          %p1082 = pneg %p194
        $region54: #{tpu_custom_call.1} parent=47 // pred_check_branch
          %1084 = sbr.rel (%p1082) target = $region56
        $region55: #{tpu_custom_call.1} parent=47 // pred_region
          %s1086 = ssub.s32 256, 256
          %1087 = vsyncadd %s1078, %s1086
          %s1088 = smul.addr %s24, 2
          %s1089 = smul.addr %s1088, 128
          %s1090 = scalar_lea.hbm %s7, %s1089
          %s1092 = sshll.u32 %s1081, 4
          %s1093 = int_to_ptr.vmem [resolvable:$true] %s1092
          %1095 = dma.vmem_to_hbm [thread:$0]  %s1093, 256, %s1090, %s1078
        $region56: #{tpu_custom_call.1} parent=47 // pred_fallthru
          _
      $region48: #{tpu_custom_call.1} parent=5 // pred_fallthru
        _
      %p1096 = scmp.le.s32.totalorder 2, %s19
      // Predicated region
      $region57: #{tpu_custom_call.1} parent=5 // pred_check
        %p1097 = pneg %p1096
      $region58: #{tpu_custom_call.1} parent=5 // pred_check_branch
        %1099 = sbr.rel (%p1097) target = $region60
      $region59: #{tpu_custom_call.1} parent=5 // pred_region
        %s1100 = ssub.s32 %s19, 2
        // Predicated region
        $region61: #{tpu_custom_call.1} parent=59 // pred_check
          %p1101 = pneg %p200
        $region62: #{tpu_custom_call.1} parent=59 // pred_check_branch
          %1103 = sbr.rel (%p1101) target = $region64
        $region63: #{tpu_custom_call.1} parent=59 // pred_region
          %s1104 = sand.u32 %s185, 1
          %s1105 = scalar_lea.sflag [#allocation4], %s1104
          %s1106 = sand.u32 %s185, 1
          %s1107 = smul.addr %s1106, 16
          %s1108 = scalar_lea.vmem [#allocation5], %s1107
          %1109 = dma.done %s1105, 256
        $region64: #{tpu_custom_call.1} parent=59 // pred_fallthru
          _
      $region60: #{tpu_custom_call.1} parent=5 // pred_fallthru
        _
    $region6: #{tpu_custom_call.1} parent=1 // loop_footer
      %s23 = sadd.s32 1, %s19
    $region7: #{tpu_custom_call.1} parent=1 // loop_footer_branch
      %18 = sbr.rel target = $region3
    $region8: #{tpu_custom_call.1} parent=1 // loop_exit
      _
    %1110 = vsyncpa [#allocation3], 1
    %s1111 = scalar_lea.sflag [#allocation3], 1
    %1112 = vsyncpa %s1111, 1
    %1113 = vsyncpa [#allocation4], 1
    %s1114 = scalar_lea.sflag [#allocation4], 1
    %1115 = vsyncpa %s1114, 1

</llo_original>
